<compile_context>
chip_gen: v5e
topology: v5e:2x2
jax: 0.10.0
libtpu: 0.0.40
codegen_flags: <defaults>
</compile_context>

<pallas_src>
import math
import functools

import jax
import jax.numpy as jnp
from jax import lax
from jax.experimental import pallas as pl
from jax.experimental.pallas import tpu as pltpu


# --------------------------------------------------------------------------
# Kernel: one (tb, tn) tile of  s * (normalize(x) @ normalize(W).T)
# --------------------------------------------------------------------------
def arcface_cosine_kernel(xn_ref, w_ref, o_ref, *, s):
    w = w_ref[...].astype(jnp.float32)                      # (tn, D) weight rows
    # L2-normalize the weight tile:  w / max(||w||, 1e-12) == w * rsqrt(max(||w||^2, 1e-24))
    ssq = jnp.sum(w * w, axis=-1, keepdims=True)
    wn = w * lax.rsqrt(jnp.maximum(ssq, 1e-24))

    # cosine = xn @ wn.T without an explicit transpose: contract last dims.
    cosine = lax.dot_general(
        xn_ref[...], wn,
        dimension_numbers=(((1,), (1,)), ((), ())),
        preferred_element_type=jnp.float32,
    )                                                       # (tb, tn)

    o_ref[...] = (cosine * s).astype(o_ref.dtype)           # lane-dense store


# --------------------------------------------------------------------------
# Tile / VMEM sizing helpers
# --------------------------------------------------------------------------
def _vmem_budget_bytes():
    """Per-generation scoped-VMEM budget (leaves headroom for Mosaic scratch)."""
    cap = 64 << 20  # conservative fallback: v7x per-TensorCore VMEM
    try:
        info = pltpu.get_tpu_info()
        cap = int(getattr(info, "vmem_capacity_bytes", cap)) or cap
    except Exception:
        pass
    return max(32 << 20, min(int(cap * 0.8), cap - (8 << 20)))


def _tile_candidates(n, unit, max_tile):
    """Divisors of n that are multiples of `unit`, descending, capped at max_tile.
    The full extent n is always a legal (layout-wise) fallback."""
    cands = []
    upper = min(n, max_tile)
    start = upper - (upper % unit)
    for t in range(start, 0, -unit):
        if n % t == 0:
            cands.append(t)
    if n <= max_tile and n not in cands:
        cands.insert(0, n)
    if not cands:
        cands.append(n)
    return cands


def _pick_tiles(B, C, D, w_itemsize, budget, max_tb=4096, max_tn=2048):
    """Pick (tb, tn): prefer the largest class tile (amortizes the ~0.35us
    per-step overhead on the weight-streaming axis), then the largest batch
    tile, subject to the double-buffered VMEM footprint fitting the budget."""
    tn_cands = _tile_candidates(C, 128, max_tn)
    tb_cands = _tile_candidates(B, 8, max_tb)

    def bytes_needed(tb, tn):
        return (2 * tn * D * w_itemsize   # weight tile   (double buffered)
                + 2 * tb * D * 4          # xn tile       (double buffered)
                + 2 * tb * tn * 4         # output tile   (double buffered)
                + (2 << 20))              # Mosaic internal scratch headroom

    for tn in tn_cands:
        for tb in tb_cands:
            if bytes_needed(tb, tn) <= budget:
                return tb, tn
    return tb_cands[-1], tn_cands[-1]     # smallest combo (may still OOM; explicit)


# --------------------------------------------------------------------------
# Forward wrapper
# --------------------------------------------------------------------------
def arcface_forward(x, weight, label, *, s=64.0, m=0.5, easy_margin=False,
                    weight_dtype=None):
    """x: (B, in_features) f32, weight: (out_features, in_features) f32,
       label: (B,) int. Returns (B, out_features) f32 ArcFace logits.

       weight_dtype: optionally jnp.bfloat16 to halve weight HBM traffic
       (accuracy trade-off vs the f32 PyTorch reference; default f32)."""
    B, D = x.shape
    C, D2 = weight.shape
    assert D == D2, "weight must be (out_features, in_features)"

    cos_m = math.cos(m)
    sin_m = math.sin(m)
    th = math.cos(math.pi - m)
    mm = math.sin(math.pi - m) * m

    # Hoisted x-normalization (once, not once per weight tile).  Matches
    # F.normalize: x / max(||x||, 1e-12).
    xf = x.astype(jnp.float32)
    xn = xf * lax.rsqrt(jnp.maximum(jnp.sum(xf * xf, axis=-1, keepdims=True), 1e-24))

    w_in = weight if weight_dtype is None else weight.astype(weight_dtype)
    w_itemsize = jnp.dtype(w_in.dtype).itemsize

    budget = _vmem_budget_bytes()
    tb, tn = _pick_tiles(B, C, D, w_itemsize, budget)
    assert C % tn == 0 and B % tb == 0, "tile selection must evenly divide (B, C)"
    # TODO(synk): ragged last class tile (C not divisible by any candidate)
    # would need masked stores; currently we fall back to tn == C.

    kernel = functools.partial(arcface_cosine_kernel, s=s)

    # Grid: class tiles OUTER (weight tile index constant across the inner
    # batch sweep -> each weight tile is streamed from HBM exactly once),
    # batch tiles INNER.  Both axes are embarrassingly parallel.
    logits = pl.pallas_call(
        kernel,
        out_shape=jax.ShapeDtypeStruct((B, C), jnp.float32),
        grid_spec=pltpu.PrefetchScalarGridSpec(
            num_scalar_prefetch=0,
            grid=(C // tn, B // tb),
            in_specs=[
                pl.BlockSpec((tb, D), lambda j, i: (i, 0)),   # xn batch block
                pl.BlockSpec((tn, D), lambda j, i: (j, 0)),   # weight class tile
            ],
            out_specs=pl.BlockSpec((tb, tn), lambda j, i: (i, j)),
        ),
        compiler_params=pltpu.CompilerParams(
            dimension_semantics=("parallel", "parallel"),
            vmem_limit_bytes=budget,
        ),
    )(xn, w_in)

    # ---- O(B) margin epilogue (exact: phi only replaces the target column) ----
    lbl = label.astype(jnp.int32)
    rows = jnp.arange(B, dtype=jnp.int32)
    cos_t = logits[rows, lbl] / s                       # bit-exact for power-of-two s
    sine_t = jnp.sqrt(jnp.clip(1.0 - cos_t * cos_t, 0.0, 1.0))
    phi_t = cos_t * cos_m - sine_t * sin_m
    if easy_margin:
        phi_t = jnp.where(cos_t > 0.0, phi_t, cos_t)
    else:
        phi_t = jnp.where(cos_t > th, phi_t, cos_t - mm)
    return logits.at[rows, lbl].set(phi_t * s)


# --------------------------------------------------------------------------
# Pure-JAX reference (mirrors the PyTorch module)
# --------------------------------------------------------------------------
def arcface_reference(x, weight, label, *, s=64.0, m=0.5, easy_margin=False):
    eps = 1e-12
    xn = x / jnp.maximum(jnp.linalg.norm(x, axis=-1, keepdims=True), eps)
    wn = weight / jnp.maximum(jnp.linalg.norm(weight, axis=-1, keepdims=True), eps)
    cosine = xn @ wn.T
    sine = jnp.sqrt(1.0 - cosine ** 2)
    cos_m, sin_m = math.cos(m), math.sin(m)
    th, mm = math.cos(math.pi - m), math.sin(math.pi - m) * m
    phi = cosine * cos_m - sine * sin_m
    phi = (jnp.where(cosine > 0, phi, cosine) if easy_margin
           else jnp.where(cosine > th, phi, cosine - mm))
    one_hot = jax.nn.one_hot(label, weight.shape[0], dtype=cosine.dtype)
    return (one_hot * phi + (1.0 - one_hot) * cosine) * s


if __name__ == "__main__":
    B, in_features, out_features = 8, 32, 256

    key = jax.random.PRNGKey(0)
    kx, kw, kl = jax.random.split(key, 3)

    x = jax.random.normal(kx, (B, in_features), dtype=jnp.float32)
    # xavier_uniform_ for weight of shape (out_features, in_features)
    bound = math.sqrt(6.0 / (in_features + out_features))
    weight = jax.random.uniform(kw, (out_features, in_features),
                                minval=-bound, maxval=bound, dtype=jnp.float32)
    label = jax.random.randint(kl, (B,), 0, out_features, dtype=jnp.int32)

    ok = True
    for easy in (False, True):
        out = arcface_forward(x, weight, label, s=64.0, m=0.5, easy_margin=easy)
        out = jax.block_until_ready(out)
        ref = arcface_reference(x, weight, label, s=64.0, m=0.5, easy_margin=easy)
        ok &= out.shape == (B, out_features)
        ok &= bool(jnp.allclose(out, ref, atol=1e-3, rtol=1e-3))

    assert ok
    print("KERNEL_OK")
</pallas_src>

<mosaic_0001>
module attributes {stable_mosaic.version = 11 : i64} {
  func.func @arcface_cosine_kernel(%arg0: i32, %arg1: i32, %arg2: memref<8x32xf32, #tpu.memory_space<vmem>>, %arg3: memref<256x32xf32, #tpu.memory_space<vmem>>, %arg4: memref<8x256xf32, #tpu.memory_space<vmem>>) attributes {dimension_semantics = [#tpu.dimension_semantics<parallel>, #tpu.dimension_semantics<parallel>], iteration_bounds = array<i64: 1, 1>, scalar_prefetch = 0 : i64, scratch_operands = 0 : i64, tpu.core_type = #tpu.core_type<tc>, window_params = [{transform_indices = @transform_0, window_bounds = array<i64: 8, 32>}, {transform_indices = @transform_1, window_bounds = array<i64: 256, 32>}, {transform_indices = @transform_2, window_bounds = array<i64: 8, 256>}]} {
    %c0 = arith.constant 0 : index
    %c0_0 = arith.constant 0 : index
    %0 = vector.load %arg3[%c0, %c0_0] : memref<256x32xf32, #tpu.memory_space<vmem>>, vector<256x32xf32>
    %1 = arith.mulf %0, %0 : vector<256x32xf32>
    %cst = arith.constant dense<0.000000e+00> : vector<256xf32>
    %2 = vector.multi_reduction <add>, %1, %cst [1] : vector<256x32xf32> to vector<256xf32>
    %3 = vector.shape_cast %2 : vector<256xf32> to vector<256x1xf32>
    %cst_1 = arith.constant 1.000000e-24 : f32
    %4 = vector.broadcast %cst_1 : f32 to vector<256x1xf32>
    %5 = arith.maximumf %3, %4 : vector<256x1xf32>
    %6 = math.rsqrt %5 : vector<256x1xf32>
    %7 = vector.broadcast %6 : vector<256x1xf32> to vector<256x32xf32>
    %8 = arith.mulf %0, %7 : vector<256x32xf32>
    %c0_2 = arith.constant 0 : index
    %c0_3 = arith.constant 0 : index
    %9 = vector.load %arg2[%c0_2, %c0_3] : memref<8x32xf32, #tpu.memory_space<vmem>>, vector<8x32xf32>
    %cst_4 = arith.constant dense<0.000000e+00> : vector<8x256xf32>
    %10 = tpu.matmul %9, %8, %cst_4 {dimension_numbers = #tpu.dot_dimension_numbers<[1], [1], [0], [0], [0, 0, 1, 0], [], []>} : vector<8x32xf32>, vector<256x32xf32>, vector<8x256xf32> -> vector<8x256xf32>
    %cst_5 = arith.constant 6.400000e+01 : f32
    %11 = vector.broadcast %cst_5 : f32 to vector<8x256xf32>
    %12 = arith.mulf %10, %11 : vector<8x256xf32>
    %c0_6 = arith.constant 0 : index
    %c0_7 = arith.constant 0 : index
    %13 = vector.load %arg4[%c0_6, %c0_7] : memref<8x256xf32, #tpu.memory_space<vmem>>, vector<8x256xf32>
    tpu.vector_store %arg4[%c0_6, %c0_7], %12 {strides = array<i32>} : memref<8x256xf32, #tpu.memory_space<vmem>>, vector<8x256xf32>,
    return
  }
  func.func @transform_0(%arg0: i32, %arg1: i32) -> (i32, i32) {
    %c0_i32 = arith.constant 0 : i32
    %c0_i32_0 = arith.constant 0 : i32
    return %arg1, %c0_i32 : i32, i32
  }
  func.func @transform_1(%arg0: i32, %arg1: i32) -> (i32, i32) {
    %c0_i32 = arith.constant 0 : i32
    %c0_i32_0 = arith.constant 0 : i32
    return %arg0, %c0_i32 : i32, i32
  }
  func.func @transform_2(%arg0: i32, %arg1: i32) -> (i32, i32) {
    %c0_i32 = arith.constant 0 : i32
    return %arg1, %arg0 : i32, i32
  }
}

</mosaic_0001>

<llo_original>
// kernel: tpu_custom_call.1
$region0: #{tpu_custom_call.1}
  #allocation0 [shape = 'u32[]', space=smem, size = 0x4, offset = 0x4, fixed_abs, tag = 'smem constant byte address 0x4 - core index']
  #allocation1 [shape = 'u32[72,128]{1,0:T(1,128)}', space=vmem, size = 0x9000, scoped, tag = 'internal scratch']
  %s0 = inlined_call_operand.vmem [shape: f32[8,32], index: 0, kind: input, shape index: {}]
  %s1 = inlined_call_operand.vmem [shape: f32[256,32], index: 1, kind: input, shape index: {}]
  %s2 = inlined_call_operand.hbm [shape: f32[8,256], index: 2, kind: output, shape index: {}]
  %s3 = sld [smem:[#allocation0]]
  $region18: #{tpu_custom_call.1} parent=0
    _
  %s5 = ssub.s32 1, %s3
  %s6 = scalar_select 0, %s5, %s3
  $region1: #{tpu_custom_call.1} parent=0
    #allocation2 [shape = 'u8[8192]{0}', space=vmem, size = 0x2000, scoped, tag = 'output window, operand 0, single buffered']
    #allocation3 [shape = 's32[1]{0}', space=sflag, size = 0x4, scoped, tag = 'scoped memory for tpu_custom_call.1']
    %7 = vsyncpa [#allocation3], 0
    // Predicated region
    $region2: #{tpu_custom_call.1} parent=1 // pred_check
      _
    $region3: #{tpu_custom_call.1} parent=1 // pred_check_branch
      %9 = sbr.rel (0) target = $region5
    $region4: #{tpu_custom_call.1} parent=1 // pred_region
      _
    $region5: #{tpu_custom_call.1} parent=1 // pred_fallthru
      _
    // Predicated region
    $region6: #{tpu_custom_call.1} parent=1 // pred_check
      _
    $region7: #{tpu_custom_call.1} parent=1 // pred_check_branch
      %11 = sbr.rel (0) target = $region9
    $region8: #{tpu_custom_call.1} parent=1 // pred_region
      _
    $region9: #{tpu_custom_call.1} parent=1 // pred_fallthru
      _
    %v12 = vld [vmem:[%s1] sm:$0xff]
    %v13 = vld [vmem:[%s1 + $0x8] sm:$0xff]
    %v14 = vld [vmem:[%s1 + $0x10] sm:$0xff]
    %v15 = vld [vmem:[%s1 + $0x18] sm:$0xff]
    %v16 = vld [vmem:[%s1 + $0x20] sm:$0xff]
    %v17 = vld [vmem:[%s1 + $0x28] sm:$0xff]
    %v18 = vld [vmem:[%s1 + $0x30] sm:$0xff]
    %v19 = vld [vmem:[%s1 + $0x38] sm:$0xff]
    %v20 = vld [vmem:[%s1 + $0x40] sm:$0xff]
    %v21 = vld [vmem:[%s1 + $0x48] sm:$0xff]
    %v22 = vld [vmem:[%s1 + $0x50] sm:$0xff]
    %v23 = vld [vmem:[%s1 + $0x58] sm:$0xff]
    %v24 = vld [vmem:[%s1 + $0x60] sm:$0xff]
    %v25 = vld [vmem:[%s1 + $0x68] sm:$0xff]
    %v26 = vld [vmem:[%s1 + $0x70] sm:$0xff]
    %v27 = vld [vmem:[%s1 + $0x78] sm:$0xff]
    %v28 = vld [vmem:[%s1 + $0x80] sm:$0xff]
    %v29 = vld [vmem:[%s1 + $0x88] sm:$0xff]
    %v30 = vld [vmem:[%s1 + $0x90] sm:$0xff]
    %v31 = vld [vmem:[%s1 + $0x98] sm:$0xff]
    %v32 = vld [vmem:[%s1 + $0xa0] sm:$0xff]
    %v33 = vld [vmem:[%s1 + $0xa8] sm:$0xff]
    %v34 = vld [vmem:[%s1 + $0xb0] sm:$0xff]
    %v35 = vld [vmem:[%s1 + $0xb8] sm:$0xff]
    %v36 = vld [vmem:[%s1 + $0xc0] sm:$0xff]
    %v37 = vld [vmem:[%s1 + $0xc8] sm:$0xff]
    %v38 = vld [vmem:[%s1 + $0xd0] sm:$0xff]
    %v39 = vld [vmem:[%s1 + $0xd8] sm:$0xff]
    %v40 = vld [vmem:[%s1 + $0xe0] sm:$0xff]
    %v41 = vld [vmem:[%s1 + $0xe8] sm:$0xff]
    %v42 = vld [vmem:[%s1 + $0xf0] sm:$0xff]
    %v43 = vld [vmem:[%s1 + $0xf8] sm:$0xff]
    %v44 = vmul.f32 %v12, %v12
    %v45 = vmul.f32 %v13, %v13
    %v46 = vmul.f32 %v14, %v14
    %v47 = vmul.f32 %v15, %v15
    %v48 = vmul.f32 %v16, %v16
    %v49 = vmul.f32 %v17, %v17
    %v50 = vmul.f32 %v18, %v18
    %v51 = vmul.f32 %v19, %v19
    %v52 = vmul.f32 %v20, %v20
    %v53 = vmul.f32 %v21, %v21
    %v54 = vmul.f32 %v22, %v22
    %v55 = vmul.f32 %v23, %v23
    %v56 = vmul.f32 %v24, %v24
    %v57 = vmul.f32 %v25, %v25
    %v58 = vmul.f32 %v26, %v26
    %v59 = vmul.f32 %v27, %v27
    %v60 = vmul.f32 %v28, %v28
    %v61 = vmul.f32 %v29, %v29
    %v62 = vmul.f32 %v30, %v30
    %v63 = vmul.f32 %v31, %v31
    %v64 = vmul.f32 %v32, %v32
    %v65 = vmul.f32 %v33, %v33
    %v66 = vmul.f32 %v34, %v34
    %v67 = vmul.f32 %v35, %v35
    %v68 = vmul.f32 %v36, %v36
    %v69 = vmul.f32 %v37, %v37
    %v70 = vmul.f32 %v38, %v38
    %v71 = vmul.f32 %v39, %v39
    %v72 = vmul.f32 %v40, %v40
    %v73 = vmul.f32 %v41, %v41
    %v74 = vmul.f32 %v42, %v42
    %v75 = vmul.f32 %v43, %v43
    %vm76 = vcmask 261120
    %v77 = vsel %vm76, %v44, 0.0
    %78 = vadd.xlane.f32.xlu0 %v77
    %v79 = vpop.xlane.xlu0 %78
    %v80 = vsel %vm76, %v45, 0.0
    %81 = vadd.xlane.f32.xlu0 %v80
    %v82 = vpop.xlane.xlu0 %81
    %v83 = vsel %vm76, %v46, 0.0
    %84 = vadd.xlane.f32.xlu0 %v83
    %v85 = vpop.xlane.xlu0 %84
    %v86 = vsel %vm76, %v47, 0.0
    %87 = vadd.xlane.f32.xlu0 %v86
    %v88 = vpop.xlane.xlu0 %87
    %v89 = vsel %vm76, %v48, 0.0
    %90 = vadd.xlane.f32.xlu0 %v89
    %v91 = vpop.xlane.xlu0 %90
    %v92 = vsel %vm76, %v49, 0.0
    %93 = vadd.xlane.f32.xlu0 %v92
    %v94 = vpop.xlane.xlu0 %93
    %v95 = vsel %vm76, %v50, 0.0
    %96 = vadd.xlane.f32.xlu0 %v95
    %v97 = vpop.xlane.xlu0 %96
    %v98 = vsel %vm76, %v51, 0.0
    %99 = vadd.xlane.f32.xlu0 %v98
    %v100 = vpop.xlane.xlu0 %99
    %v101 = vsel %vm76, %v52, 0.0
    %102 = vadd.xlane.f32.xlu0 %v101
    %v103 = vpop.xlane.xlu0 %102
    %v104 = vsel %vm76, %v53, 0.0
    %105 = vadd.xlane.f32.xlu0 %v104
    %v106 = vpop.xlane.xlu0 %105
    %v107 = vsel %vm76, %v54, 0.0
    %108 = vadd.xlane.f32.xlu0 %v107
    %v109 = vpop.xlane.xlu0 %108
    %v110 = vsel %vm76, %v55, 0.0
    %111 = vadd.xlane.f32.xlu0 %v110
    %v112 = vpop.xlane.xlu0 %111
    %v113 = vsel %vm76, %v56, 0.0
    %114 = vadd.xlane.f32.xlu0 %v113
    %v115 = vpop.xlane.xlu0 %114
    %v116 = vsel %vm76, %v57, 0.0
    %117 = vadd.xlane.f32.xlu0 %v116
    %v118 = vpop.xlane.xlu0 %117
    %v119 = vsel %vm76, %v58, 0.0
    %120 = vadd.xlane.f32.xlu0 %v119
    %v121 = vpop.xlane.xlu0 %120
    %v122 = vsel %vm76, %v59, 0.0
    %123 = vadd.xlane.f32.xlu0 %v122
    %v124 = vpop.xlane.xlu0 %123
    %v125 = vsel %vm76, %v60, 0.0
    %126 = vadd.xlane.f32.xlu0 %v125
    %v127 = vpop.xlane.xlu0 %126
    %v128 = vsel %vm76, %v61, 0.0
    %129 = vadd.xlane.f32.xlu0 %v128
    %v130 = vpop.xlane.xlu0 %129
    %v131 = vsel %vm76, %v62, 0.0
    %132 = vadd.xlane.f32.xlu0 %v131
    %v133 = vpop.xlane.xlu0 %132
    %v134 = vsel %vm76, %v63, 0.0
    %135 = vadd.xlane.f32.xlu0 %v134
    %v136 = vpop.xlane.xlu0 %135
    %v137 = vsel %vm76, %v64, 0.0
    %138 = vadd.xlane.f32.xlu0 %v137
    %v139 = vpop.xlane.xlu0 %138
    %v140 = vsel %vm76, %v65, 0.0
    %141 = vadd.xlane.f32.xlu0 %v140
    %v142 = vpop.xlane.xlu0 %141
    %v143 = vsel %vm76, %v66, 0.0
    %144 = vadd.xlane.f32.xlu0 %v143
    %v145 = vpop.xlane.xlu0 %144
    %v146 = vsel %vm76, %v67, 0.0
    %147 = vadd.xlane.f32.xlu0 %v146
    %v148 = vpop.xlane.xlu0 %147
    %v149 = vsel %vm76, %v68, 0.0
    %150 = vadd.xlane.f32.xlu0 %v149
    %v151 = vpop.xlane.xlu0 %150
    %v152 = vsel %vm76, %v69, 0.0
    %153 = vadd.xlane.f32.xlu0 %v152
    %v154 = vpop.xlane.xlu0 %153
    %v155 = vsel %vm76, %v70, 0.0
    %156 = vadd.xlane.f32.xlu0 %v155
    %v157 = vpop.xlane.xlu0 %156
    %v158 = vsel %vm76, %v71, 0.0
    %159 = vadd.xlane.f32.xlu0 %v158
    %v160 = vpop.xlane.xlu0 %159
    %v161 = vsel %vm76, %v72, 0.0
    %162 = vadd.xlane.f32.xlu0 %v161
    %v163 = vpop.xlane.xlu0 %162
    %v164 = vsel %vm76, %v73, 0.0
    %165 = vadd.xlane.f32.xlu0 %v164
    %v166 = vpop.xlane.xlu0 %165
    %v167 = vsel %vm76, %v74, 0.0
    %168 = vadd.xlane.f32.xlu0 %v167
    %v169 = vpop.xlane.xlu0 %168
    %v170 = vsel %vm76, %v75, 0.0
    %171 = vadd.xlane.f32.xlu0 %v170
    %v172 = vpop.xlane.xlu0 %171
    %v173 = vmax.f32 %v79, 1e-24
    %v174 = vmax.f32 %v82, 1e-24
    %v175 = vmax.f32 %v85, 1e-24
    %v176 = vmax.f32 %v88, 1e-24
    %v177 = vmax.f32 %v91, 1e-24
    %v178 = vmax.f32 %v94, 1e-24
    %v179 = vmax.f32 %v97, 1e-24
    %v180 = vmax.f32 %v100, 1e-24
    %v181 = vmax.f32 %v103, 1e-24
    %v182 = vmax.f32 %v106, 1e-24
    %v183 = vmax.f32 %v109, 1e-24
    %v184 = vmax.f32 %v112, 1e-24
    %v185 = vmax.f32 %v115, 1e-24
    %v186 = vmax.f32 %v118, 1e-24
    %v187 = vmax.f32 %v121, 1e-24
    %v188 = vmax.f32 %v124, 1e-24
    %v189 = vmax.f32 %v127, 1e-24
    %v190 = vmax.f32 %v130, 1e-24
    %v191 = vmax.f32 %v133, 1e-24
    %v192 = vmax.f32 %v136, 1e-24
    %v193 = vmax.f32 %v139, 1e-24
    %v194 = vmax.f32 %v142, 1e-24
    %v195 = vmax.f32 %v145, 1e-24
    %v196 = vmax.f32 %v148, 1e-24
    %v197 = vmax.f32 %v151, 1e-24
    %v198 = vmax.f32 %v154, 1e-24
    %v199 = vmax.f32 %v157, 1e-24
    %v200 = vmax.f32 %v160, 1e-24
    %v201 = vmax.f32 %v163, 1e-24
    %v202 = vmax.f32 %v166, 1e-24
    %v203 = vmax.f32 %v169, 1e-24
    %v204 = vmax.f32 %v172, 1e-24
    %v205 = vrsqrt.pop %v173
    %v206 = vmul.f32 %v205, %v173
    %v207 = vmul.f32 %v206, %v205
    %v208 = vmul.f32 0.5, %v207
    %v209 = vsub.f32 1.5, %v208
    %v210 = vmul.f32 %v205, %v209
    %vm211 = vweird.f32 %v173
    %vm212 = vweird.f32 %v205
    %vm213 = vmor %vm211, %vm212
    %v214 = vsel %vm213, %v205, %v210
    %v215 = vrsqrt.pop %v174
    %v216 = vmul.f32 %v215, %v174
    %v217 = vmul.f32 %v216, %v215
    %v218 = vmul.f32 0.5, %v217
    %v219 = vsub.f32 1.5, %v218
    %v220 = vmul.f32 %v215, %v219
    %vm221 = vweird.f32 %v174
    %vm222 = vweird.f32 %v215
    %vm223 = vmor %vm221, %vm222
    %v224 = vsel %vm223, %v215, %v220
    %v225 = vrsqrt.pop %v175
    %v226 = vmul.f32 %v225, %v175
    %v227 = vmul.f32 %v226, %v225
    %v228 = vmul.f32 0.5, %v227
    %v229 = vsub.f32 1.5, %v228
    %v230 = vmul.f32 %v225, %v229
    %vm231 = vweird.f32 %v175
    %vm232 = vweird.f32 %v225
    %vm233 = vmor %vm231, %vm232
    %v234 = vsel %vm233, %v225, %v230
    %v235 = vrsqrt.pop %v176
    %v236 = vmul.f32 %v235, %v176
    %v237 = vmul.f32 %v236, %v235
    %v238 = vmul.f32 0.5, %v237
    %v239 = vsub.f32 1.5, %v238
    %v240 = vmul.f32 %v235, %v239
    %vm241 = vweird.f32 %v176
    %vm242 = vweird.f32 %v235
    %vm243 = vmor %vm241, %vm242
    %v244 = vsel %vm243, %v235, %v240
    %v245 = vrsqrt.pop %v177
    %v246 = vmul.f32 %v245, %v177
    %v247 = vmul.f32 %v246, %v245
    %v248 = vmul.f32 0.5, %v247
    %v249 = vsub.f32 1.5, %v248
    %v250 = vmul.f32 %v245, %v249
    %vm251 = vweird.f32 %v177
    %vm252 = vweird.f32 %v245
    %vm253 = vmor %vm251, %vm252
    %v254 = vsel %vm253, %v245, %v250
    %v255 = vrsqrt.pop %v178
    %v256 = vmul.f32 %v255, %v178
    %v257 = vmul.f32 %v256, %v255
    %v258 = vmul.f32 0.5, %v257
    %v259 = vsub.f32 1.5, %v258
    %v260 = vmul.f32 %v255, %v259
    %vm261 = vweird.f32 %v178
    %vm262 = vweird.f32 %v255
    %vm263 = vmor %vm261, %vm262
    %v264 = vsel %vm263, %v255, %v260
    %v265 = vrsqrt.pop %v179
    %v266 = vmul.f32 %v265, %v179
    %v267 = vmul.f32 %v266, %v265
    %v268 = vmul.f32 0.5, %v267
    %v269 = vsub.f32 1.5, %v268
    %v270 = vmul.f32 %v265, %v269
    %vm271 = vweird.f32 %v179
    %vm272 = vweird.f32 %v265
    %vm273 = vmor %vm271, %vm272
    %v274 = vsel %vm273, %v265, %v270
    %v275 = vrsqrt.pop %v180
    %v276 = vmul.f32 %v275, %v180
    %v277 = vmul.f32 %v276, %v275
    %v278 = vmul.f32 0.5, %v277
    %v279 = vsub.f32 1.5, %v278
    %v280 = vmul.f32 %v275, %v279
    %vm281 = vweird.f32 %v180
    %vm282 = vweird.f32 %v275
    %vm283 = vmor %vm281, %vm282
    %v284 = vsel %vm283, %v275, %v280
    %v285 = vrsqrt.pop %v181
    %v286 = vmul.f32 %v285, %v181
    %v287 = vmul.f32 %v286, %v285
    %v288 = vmul.f32 0.5, %v287
    %v289 = vsub.f32 1.5, %v288
    %v290 = vmul.f32 %v285, %v289
    %vm291 = vweird.f32 %v181
    %vm292 = vweird.f32 %v285
    %vm293 = vmor %vm291, %vm292
    %v294 = vsel %vm293, %v285, %v290
    %v295 = vrsqrt.pop %v182
    %v296 = vmul.f32 %v295, %v182
    %v297 = vmul.f32 %v296, %v295
    %v298 = vmul.f32 0.5, %v297
    %v299 = vsub.f32 1.5, %v298
    %v300 = vmul.f32 %v295, %v299
    %vm301 = vweird.f32 %v182
    %vm302 = vweird.f32 %v295
    %vm303 = vmor %vm301, %vm302
    %v304 = vsel %vm303, %v295, %v300
    %v305 = vrsqrt.pop %v183
    %v306 = vmul.f32 %v305, %v183
    %v307 = vmul.f32 %v306, %v305
    %v308 = vmul.f32 0.5, %v307
    %v309 = vsub.f32 1.5, %v308
    %v310 = vmul.f32 %v305, %v309
    %vm311 = vweird.f32 %v183
    %vm312 = vweird.f32 %v305
    %vm313 = vmor %vm311, %vm312
    %v314 = vsel %vm313, %v305, %v310
    %v315 = vrsqrt.pop %v184
    %v316 = vmul.f32 %v315, %v184
    %v317 = vmul.f32 %v316, %v315
    %v318 = vmul.f32 0.5, %v317
    %v319 = vsub.f32 1.5, %v318
    %v320 = vmul.f32 %v315, %v319
    %vm321 = vweird.f32 %v184
    %vm322 = vweird.f32 %v315
    %vm323 = vmor %vm321, %vm322
    %v324 = vsel %vm323, %v315, %v320
    %v325 = vrsqrt.pop %v185
    %v326 = vmul.f32 %v325, %v185
    %v327 = vmul.f32 %v326, %v325
    %v328 = vmul.f32 0.5, %v327
    %v329 = vsub.f32 1.5, %v328
    %v330 = vmul.f32 %v325, %v329
    %vm331 = vweird.f32 %v185
    %vm332 = vweird.f32 %v325
    %vm333 = vmor %vm331, %vm332
    %v334 = vsel %vm333, %v325, %v330
    %v335 = vrsqrt.pop %v186
    %v336 = vmul.f32 %v335, %v186
    %v337 = vmul.f32 %v336, %v335
    %v338 = vmul.f32 0.5, %v337
    %v339 = vsub.f32 1.5, %v338
    %v340 = vmul.f32 %v335, %v339
    %vm341 = vweird.f32 %v186
    %vm342 = vweird.f32 %v335
    %vm343 = vmor %vm341, %vm342
    %v344 = vsel %vm343, %v335, %v340
    %v345 = vrsqrt.pop %v187
    %v346 = vmul.f32 %v345, %v187
    %v347 = vmul.f32 %v346, %v345
    %v348 = vmul.f32 0.5, %v347
    %v349 = vsub.f32 1.5, %v348
    %v350 = vmul.f32 %v345, %v349
    %vm351 = vweird.f32 %v187
    %vm352 = vweird.f32 %v345
    %vm353 = vmor %vm351, %vm352
    %v354 = vsel %vm353, %v345, %v350
    %v355 = vrsqrt.pop %v188
    %v356 = vmul.f32 %v355, %v188
    %v357 = vmul.f32 %v356, %v355
    %v358 = vmul.f32 0.5, %v357
    %v359 = vsub.f32 1.5, %v358
    %v360 = vmul.f32 %v355, %v359
    %vm361 = vweird.f32 %v188
    %vm362 = vweird.f32 %v355
    %vm363 = vmor %vm361, %vm362
    %v364 = vsel %vm363, %v355, %v360
    %v365 = vrsqrt.pop %v189
    %v366 = vmul.f32 %v365, %v189
    %v367 = vmul.f32 %v366, %v365
    %v368 = vmul.f32 0.5, %v367
    %v369 = vsub.f32 1.5, %v368
    %v370 = vmul.f32 %v365, %v369
    %vm371 = vweird.f32 %v189
    %vm372 = vweird.f32 %v365
    %vm373 = vmor %vm371, %vm372
    %v374 = vsel %vm373, %v365, %v370
    %v375 = vrsqrt.pop %v190
    %v376 = vmul.f32 %v375, %v190
    %v377 = vmul.f32 %v376, %v375
    %v378 = vmul.f32 0.5, %v377
    %v379 = vsub.f32 1.5, %v378
    %v380 = vmul.f32 %v375, %v379
    %vm381 = vweird.f32 %v190
    %vm382 = vweird.f32 %v375
    %vm383 = vmor %vm381, %vm382
    %v384 = vsel %vm383, %v375, %v380
    %v385 = vrsqrt.pop %v191
    %v386 = vmul.f32 %v385, %v191
    %v387 = vmul.f32 %v386, %v385
    %v388 = vmul.f32 0.5, %v387
    %v389 = vsub.f32 1.5, %v388
    %v390 = vmul.f32 %v385, %v389
    %vm391 = vweird.f32 %v191
    %vm392 = vweird.f32 %v385
    %vm393 = vmor %vm391, %vm392
    %v394 = vsel %vm393, %v385, %v390
    %v395 = vrsqrt.pop %v192
    %v396 = vmul.f32 %v395, %v192
    %v397 = vmul.f32 %v396, %v395
    %v398 = vmul.f32 0.5, %v397
    %v399 = vsub.f32 1.5, %v398
    %v400 = vmul.f32 %v395, %v399
    %vm401 = vweird.f32 %v192
    %vm402 = vweird.f32 %v395
    %vm403 = vmor %vm401, %vm402
    %v404 = vsel %vm403, %v395, %v400
    %v405 = vrsqrt.pop %v193
    %v406 = vmul.f32 %v405, %v193
    %v407 = vmul.f32 %v406, %v405
    %v408 = vmul.f32 0.5, %v407
    %v409 = vsub.f32 1.5, %v408
    %v410 = vmul.f32 %v405, %v409
    %vm411 = vweird.f32 %v193
    %vm412 = vweird.f32 %v405
    %vm413 = vmor %vm411, %vm412
    %v414 = vsel %vm413, %v405, %v410
    %v415 = vrsqrt.pop %v194
    %v416 = vmul.f32 %v415, %v194
    %v417 = vmul.f32 %v416, %v415
    %v418 = vmul.f32 0.5, %v417
    %v419 = vsub.f32 1.5, %v418
    %v420 = vmul.f32 %v415, %v419
    %vm421 = vweird.f32 %v194
    %vm422 = vweird.f32 %v415
    %vm423 = vmor %vm421, %vm422
    %v424 = vsel %vm423, %v415, %v420
    %v425 = vrsqrt.pop %v195
    %v426 = vmul.f32 %v425, %v195
    %v427 = vmul.f32 %v426, %v425
    %v428 = vmul.f32 0.5, %v427
    %v429 = vsub.f32 1.5, %v428
    %v430 = vmul.f32 %v425, %v429
    %vm431 = vweird.f32 %v195
    %vm432 = vweird.f32 %v425
    %vm433 = vmor %vm431, %vm432
    %v434 = vsel %vm433, %v425, %v430
    %v435 = vrsqrt.pop %v196
    %v436 = vmul.f32 %v435, %v196
    %v437 = vmul.f32 %v436, %v435
    %v438 = vmul.f32 0.5, %v437
    %v439 = vsub.f32 1.5, %v438
    %v440 = vmul.f32 %v435, %v439
    %vm441 = vweird.f32 %v196
    %vm442 = vweird.f32 %v435
    %vm443 = vmor %vm441, %vm442
    %v444 = vsel %vm443, %v435, %v440
    %v445 = vrsqrt.pop %v197
    %v446 = vmul.f32 %v445, %v197
    %v447 = vmul.f32 %v446, %v445
    %v448 = vmul.f32 0.5, %v447
    %v449 = vsub.f32 1.5, %v448
    %v450 = vmul.f32 %v445, %v449
    %vm451 = vweird.f32 %v197
    %vm452 = vweird.f32 %v445
    %vm453 = vmor %vm451, %vm452
    %v454 = vsel %vm453, %v445, %v450
    %v455 = vrsqrt.pop %v198
    %v456 = vmul.f32 %v455, %v198
    %v457 = vmul.f32 %v456, %v455
    %v458 = vmul.f32 0.5, %v457
    %v459 = vsub.f32 1.5, %v458
    %v460 = vmul.f32 %v455, %v459
    %vm461 = vweird.f32 %v198
    %vm462 = vweird.f32 %v455
    %vm463 = vmor %vm461, %vm462
    %v464 = vsel %vm463, %v455, %v460
    %v465 = vrsqrt.pop %v199
    %v466 = vmul.f32 %v465, %v199
    %v467 = vmul.f32 %v466, %v465
    %v468 = vmul.f32 0.5, %v467
    %v469 = vsub.f32 1.5, %v468
    %v470 = vmul.f32 %v465, %v469
    %vm471 = vweird.f32 %v199
    %vm472 = vweird.f32 %v465
    %vm473 = vmor %vm471, %vm472
    %v474 = vsel %vm473, %v465, %v470
    %v475 = vrsqrt.pop %v200
    %v476 = vmul.f32 %v475, %v200
    %v477 = vmul.f32 %v476, %v475
    %v478 = vmul.f32 0.5, %v477
    %v479 = vsub.f32 1.5, %v478
    %v480 = vmul.f32 %v475, %v479
    %vm481 = vweird.f32 %v200
    %vm482 = vweird.f32 %v475
    %vm483 = vmor %vm481, %vm482
    %v484 = vsel %vm483, %v475, %v480
    %v485 = vrsqrt.pop %v201
    %v486 = vmul.f32 %v485, %v201
    %v487 = vmul.f32 %v486, %v485
    %v488 = vmul.f32 0.5, %v487
    %v489 = vsub.f32 1.5, %v488
    %v490 = vmul.f32 %v485, %v489
    %vm491 = vweird.f32 %v201
    %vm492 = vweird.f32 %v485
    %vm493 = vmor %vm491, %vm492
    %v494 = vsel %vm493, %v485, %v490
    %v495 = vrsqrt.pop %v202
    %v496 = vmul.f32 %v495, %v202
    %v497 = vmul.f32 %v496, %v495
    %v498 = vmul.f32 0.5, %v497
    %v499 = vsub.f32 1.5, %v498
    %v500 = vmul.f32 %v495, %v499
    %vm501 = vweird.f32 %v202
    %vm502 = vweird.f32 %v495
    %vm503 = vmor %vm501, %vm502
    %v504 = vsel %vm503, %v495, %v500
    %v505 = vrsqrt.pop %v203
    %v506 = vmul.f32 %v505, %v203
    %v507 = vmul.f32 %v506, %v505
    %v508 = vmul.f32 0.5, %v507
    %v509 = vsub.f32 1.5, %v508
    %v510 = vmul.f32 %v505, %v509
    %vm511 = vweird.f32 %v203
    %vm512 = vweird.f32 %v505
    %vm513 = vmor %vm511, %vm512
    %v514 = vsel %vm513, %v505, %v510
    %v515 = vrsqrt.pop %v204
    %v516 = vmul.f32 %v515, %v204
    %v517 = vmul.f32 %v516, %v515
    %v518 = vmul.f32 0.5, %v517
    %v519 = vsub.f32 1.5, %v518
    %v520 = vmul.f32 %v515, %v519
    %vm521 = vweird.f32 %v204
    %vm522 = vweird.f32 %v515
    %vm523 = vmor %vm521, %vm522
    %v524 = vsel %vm523, %v515, %v520
    %v525 = vmul.f32 %v12, %v214
    %v526 = vmul.f32 %v13, %v224
    %v527 = vmul.f32 %v14, %v234
    %v528 = vmul.f32 %v15, %v244
    %v529 = vmul.f32 %v16, %v254
    %v530 = vmul.f32 %v17, %v264
    %v531 = vmul.f32 %v18, %v274
    %v532 = vmul.f32 %v19, %v284
    %v533 = vmul.f32 %v20, %v294
    %v534 = vmul.f32 %v21, %v304
    %v535 = vmul.f32 %v22, %v314
    %v536 = vmul.f32 %v23, %v324
    %v537 = vmul.f32 %v24, %v334
    %v538 = vmul.f32 %v25, %v344
    %v539 = vmul.f32 %v26, %v354
    %v540 = vmul.f32 %v27, %v364
    %v541 = vmul.f32 %v28, %v374
    %v542 = vmul.f32 %v29, %v384
    %v543 = vmul.f32 %v30, %v394
    %v544 = vmul.f32 %v31, %v404
    %v545 = vmul.f32 %v32, %v414
    %v546 = vmul.f32 %v33, %v424
    %v547 = vmul.f32 %v34, %v434
    %v548 = vmul.f32 %v35, %v444
    %v549 = vmul.f32 %v36, %v454
    %v550 = vmul.f32 %v37, %v464
    %v551 = vmul.f32 %v38, %v474
    %v552 = vmul.f32 %v39, %v484
    %v553 = vmul.f32 %v40, %v494
    %v554 = vmul.f32 %v41, %v504
    %v555 = vmul.f32 %v42, %v514
    %v556 = vmul.f32 %v43, %v524
    %v557 = vld [vmem:[%s0] sm:$0xff]
    %v559 = vsel %vm76, %v557, 0
    %v562 = vsel %vm76, %v525, 0
    %v565 = vsel %vm76, %v526, 0
    %v568 = vsel %vm76, %v527, 0
    %v571 = vsel %vm76, %v528, 0
    %v574 = vsel %vm76, %v529, 0
    %v577 = vsel %vm76, %v530, 0
    %v580 = vsel %vm76, %v531, 0
    %v583 = vsel %vm76, %v532, 0
    %v586 = vsel %vm76, %v533, 0
    %v589 = vsel %vm76, %v534, 0
    %v592 = vsel %vm76, %v535, 0
    %v595 = vsel %vm76, %v536, 0
    %v598 = vsel %vm76, %v537, 0
    %v601 = vsel %vm76, %v538, 0
    %v604 = vsel %vm76, %v539, 0
    %v607 = vsel %vm76, %v540, 0
    %v610 = vsel %vm76, %v541, 0
    %v613 = vsel %vm76, %v542, 0
    %v616 = vsel %vm76, %v543, 0
    %v619 = vsel %vm76, %v544, 0
    %v622 = vsel %vm76, %v545, 0
    %v625 = vsel %vm76, %v546, 0
    %v628 = vsel %vm76, %v547, 0
    %v631 = vsel %vm76, %v548, 0
    %v634 = vsel %vm76, %v549, 0
    %v637 = vsel %vm76, %v550, 0
    %v640 = vsel %vm76, %v551, 0
    %v643 = vsel %vm76, %v552, 0
    %v646 = vsel %vm76, %v553, 0
    %v649 = vsel %vm76, %v554, 0
    %v652 = vsel %vm76, %v555, 0
    %v655 = vsel %vm76, %v556, 0
    %657 = vmatpush.xpose.msra.mxu0 %v607
    %658 = vmatpush.xpose.msra.mxu0 %v604
    %659 = vmatpush.xpose.msra.mxu0 %v601
    %660 = vmatpush.xpose.msra.mxu0 %v598
    %661 = vmatpush.xpose.msra.mxu0 %v595
    %662 = vmatpush.xpose.msra.mxu0 %v592
    %663 = vmatpush.xpose.msra.mxu0 %v589
    %664 = vmatpush.xpose.msra.mxu0 %v586
    %665 = vmatpush.xpose.msra.mxu0 %v583
    %666 = vmatpush.xpose.msra.mxu0 %v580
    %667 = vmatpush.xpose.msra.mxu0 %v577
    %668 = vmatpush.xpose.msra.mxu0 %v574
    %669 = vmatpush.xpose.msra.mxu0 %v571
    %670 = vmatpush.xpose.msra.mxu0 %v568
    %671 = vmatpush.xpose.msra.mxu0 %v565
    %672 = vmatpush.xpose.msra.mxu0 %v562
    %673 = vmatmul.f32.gmra.mxu0 %v559
    %v674 = vpop.f32.mrf.mxu0
    %v675 = vadd.f32 0.0, %v674
    %676 = vdwg.mxu0
    %677 = vmatpush.xpose.msra.mxu0 %v655
    %678 = vmatpush.xpose.msra.mxu0 %v652
    %679 = vmatpush.xpose.msra.mxu0 %v649
    %680 = vmatpush.xpose.msra.mxu0 %v646
    %681 = vmatpush.xpose.msra.mxu0 %v643
    %682 = vmatpush.xpose.msra.mxu0 %v640
    %683 = vmatpush.xpose.msra.mxu0 %v637
    %684 = vmatpush.xpose.msra.mxu0 %v634
    %685 = vmatpush.xpose.msra.mxu0 %v631
    %686 = vmatpush.xpose.msra.mxu0 %v628
    %687 = vmatpush.xpose.msra.mxu0 %v625
    %688 = vmatpush.xpose.msra.mxu0 %v622
    %689 = vmatpush.xpose.msra.mxu0 %v619
    %690 = vmatpush.xpose.msra.mxu0 %v616
    %691 = vmatpush.xpose.msra.mxu0 %v613
    %692 = vmatpush.xpose.msra.mxu0 %v610
    %693 = vmatmul.f32.gmra.mxu0 %v559
    %v694 = vpop.f32.mrf.mxu0
    %v695 = vadd.f32 0.0, %v694
    %696 = vdwg.mxu0
    %v697 = vmul.f32 %v675, 64.0
    %v698 = vmul.f32 %v695, 64.0
    %699 = vst [vmem:[#allocation2] sm:$0xff] %v697
    %700 = vst [vmem:[#allocation2 + $0x8] sm:$0xff] %v698
    // Predicated region
    $region10: #{tpu_custom_call.1} parent=1 // pred_check
      _
    $region11: #{tpu_custom_call.1} parent=1 // pred_check_branch
      %702 = sbr.rel (0) target = $region13
    $region12: #{tpu_custom_call.1} parent=1 // pred_region
      %704 = vsyncadd [#allocation3], 0
      %s706 = sshll.u32 [#allocation2], 4
      %s707 = int_to_ptr.vmem [resolvable:$true] %s706
      %s708 = sshll.u32 %s2, 4
      %s709 = int_to_ptr.hbm [resolvable:$true] %s708
      %711 = dma.vmem_to_hbm [thread:$0]  %s707, 256, %s709, [#allocation3]
    $region13: #{tpu_custom_call.1} parent=1 // pred_fallthru
      _
    // Predicated region
    $region14: #{tpu_custom_call.1} parent=1 // pred_check
      _
    $region15: #{tpu_custom_call.1} parent=1 // pred_check_branch
      %713 = sbr.rel (0) target = $region17
    $region16: #{tpu_custom_call.1} parent=1 // pred_region
      %715 = dma.done [#allocation3], 256
    $region17: #{tpu_custom_call.1} parent=1 // pred_fallthru
      _
    %716 = vsyncpa [#allocation3], 1

</llo_original>
